<compile_context>
chip_gen: v7x
topology: tpu7x:2x2x1
jax: 0.10.0
libtpu: 0.0.40
codegen_flags: <defaults>
</compile_context>

<pallas_src>
import functools

import jax
import jax.numpy as jnp
from jax.experimental import pallas as pl
from jax.experimental.pallas import tpu as pltpu

_LANES = 512           # lane-dense slab width (multiple of 128)
_MAX_TILE_ROWS = 2048  # 4 MiB f32 logits + 1 MiB int8 labels per tile (x2 buffers ~ 10 MiB)
_NCORES = 2            # leading "parallel" axis: 2 TCs on v7x, harmless serial split on v5e/v6e


def _round_up(x, m):
    return ((x + m - 1) // m) * m


def _sentim_loss_kernel(logits_ref, labels_ref, out_ref, acc_ref, *,
                        tiles_per_core, tile_rows, n_samples):
    c = pl.program_id(0)
    t = pl.program_id(1)

    @pl.when(t == 0)
    def _init():
        acc_ref[...] = jnp.zeros_like(acc_ref)

    x = logits_ref[...].astype(jnp.float32)      # (TR, W) interleaved class pairs
    lab = labels_ref[...].astype(jnp.int32)      # (TR, W) label duplicated per pair

    shape = x.shape
    lane = jax.lax.broadcasted_iota(jnp.int32, shape, 1)
    row = jax.lax.broadcasted_iota(jnp.int32, shape, 0)
    cls = lane & 1            # class stored in this lane (fixed by the layout)
    tag = lane >> 1           # pair slot within the row

    # One XLU lane-rotate; rolling the pair-tag alongside tells us (without
    # assuming the hardware rotation direction / wrap convention) on which
    # lane of each pair the rolled neighbour is the same-pair partner logit.
    x_r = pltpu.roll(x, shift=1, axis=1)
    tag_r = pltpu.roll(tag, shift=1, axis=1)
    counted = tag_r == tag    # exactly one lane per pair, either convention

    # C=2 specialisation of NLL(log_softmax): loss = softplus(x_wrong - x_true),
    # numerically stable form.
    # TODO(synk): out-of-range labels silently behave like "label != this class";
    # the reference NLLLoss has no ignore_index either.
    d = jnp.where(lab == cls, x_r - x, x - x_r)            # x_wrong - x_true
    loss = jnp.maximum(d, 0.0) + jnp.log1p(jnp.exp(-jnp.abs(d)))

    # Mask padding lanes/rows by the global sample index (no sentinel labels).
    row_off = (c * tiles_per_core + t) * tile_rows
    sample_idx = (row_off + row) * (_LANES // 2) + tag
    keep = jnp.logical_and(counted, sample_idx < n_samples)
    loss = jnp.where(keep, loss, 0.0)

    part = jnp.sum(loss, axis=1, keepdims=True)            # (TR, 1)
    part = jnp.sum(part, axis=0, keepdims=True)            # (1, 1)
    acc_ref[...] = acc_ref[...] + part

    @pl.when(t == pl.num_programs(1) - 1)
    def _finalize():
        out_ref[...] = jnp.broadcast_to(acc_ref[...], out_ref.shape)


def sentim_loss(logits, labels):
    """Mean cross-entropy over logits.view(-1, 2) with integer labels (C=2)."""
    logits_flat = jnp.reshape(logits, (-1,))                   # contiguous x0,x1,...
    labels_flat = jnp.reshape(labels, (-1,)).astype(jnp.int8)  # labels in {0,1}
    n = labels_flat.shape[0]
    total = logits_flat.shape[0]
    assert total == 2 * n, "logits must flatten to (N, 2)"

    rows = pl.cdiv(total, _LANES)
    tile_rows = min(_MAX_TILE_ROWS, _round_up(rows, 32))       # mult. of 32 (int8 tile safe)
    tiles = pl.cdiv(rows, tile_rows)
    tiles_per_core = pl.cdiv(tiles, _NCORES)
    rows_padded = _NCORES * tiles_per_core * tile_rows
    pad = rows_padded * _LANES - total

    # Duplicate each label onto both lanes of its logit pair (padding masked
    # in-kernel by index, so plain zero-pad is fine).
    labels_lane = jnp.repeat(labels_flat, 2)
    logits_slab = jnp.pad(logits_flat, (0, pad)).reshape(rows_padded, _LANES)
    labels_slab = jnp.pad(labels_lane, (0, pad)).reshape(rows_padded, _LANES)

    kernel = functools.partial(
        _sentim_loss_kernel,
        tiles_per_core=tiles_per_core,
        tile_rows=tile_rows,
        n_samples=n,
    )

    partials = pl.pallas_call(
        kernel,
        out_shape=jax.ShapeDtypeStruct((_NCORES, 8, 128), jnp.float32),
        grid_spec=pltpu.PrefetchScalarGridSpec(
            num_scalar_prefetch=0,
            grid=(_NCORES, tiles_per_core),
            in_specs=[
                pl.BlockSpec((tile_rows, _LANES),
                             lambda c, t: (c * tiles_per_core + t, 0)),
                pl.BlockSpec((tile_rows, _LANES),
                             lambda c, t: (c * tiles_per_core + t, 0)),
            ],
            out_specs=pl.BlockSpec((1, 8, 128), lambda c, t: (c, 0, 0)),
            scratch_shapes=[pltpu.VMEM((1, 1), jnp.float32)],
        ),
        compiler_params=pltpu.CompilerParams(
            dimension_semantics=("parallel", "arbitrary"),
            vmem_limit_bytes=32 * 1024 * 1024),
    )(logits_slab, labels_slab)

    # Each sample contributed exactly once -> divide by N.
    return jnp.sum(partials[:, 0, 0]) / jnp.float32(n)


sentim_loss_jit = jax.jit(sentim_loss)


def _reference(logits, labels):
    x = jnp.reshape(logits, (-1, 2)).astype(jnp.float32)
    y = jnp.reshape(labels, (-1,))
    logp = jax.nn.log_softmax(x, axis=-1)
    return -jnp.mean(jnp.take_along_axis(logp, y[:, None], axis=-1))


if __name__ == "__main__":
    key = jax.random.PRNGKey(0)
    k1, k2, k3, k4 = jax.random.split(key, 4)

    # Test 1: batch=2, seq=4, 2-class logits -> flattens to (8, 2)
    logits = jax.random.normal(k1, (2, 4, 2), dtype=jnp.float32)
    labels = jax.random.randint(k2, (2, 4), 0, 2, dtype=jnp.int32)
    loss = jax.block_until_ready(sentim_loss_jit(logits, labels))
    ref = _reference(logits, labels)
    assert jnp.allclose(loss, ref, atol=1e-4, rtol=1e-4), (loss, ref)

    # Test 2: odd sample count (7*143 = 1001) exercising the padding/tiling path
    logits2 = jax.random.normal(k3, (7, 143, 2), dtype=jnp.float32)
    labels2 = jax.random.randint(k4, (7, 143), 0, 2, dtype=jnp.int32)
    loss2 = jax.block_until_ready(sentim_loss_jit(logits2, labels2))
    ref2 = _reference(logits2, labels2)
    assert jnp.allclose(loss2, ref2, atol=1e-4, rtol=1e-4), (loss2, ref2)

    print("KERNEL_OK")
</pallas_src>

<mosaic_0001>
module attributes {stable_mosaic.version = 11 : i64} {
  func.func @_sentim_loss_kernel(%arg0: i32, %arg1: i32, %arg2: memref<32x512xf32, #tpu.memory_space<vmem>>, %arg3: memref<32x512xi8, #tpu.memory_space<vmem>>, %arg4: memref<1x8x128xf32, #tpu.memory_space<vmem>>, %arg5: memref<1x1xf32, #tpu.memory_space<vmem>>) attributes {dimension_semantics = [#tpu.dimension_semantics<parallel>, #tpu.dimension_semantics<arbitrary>], iteration_bounds = array<i64: 2, 1>, scalar_prefetch = 0 : i64, scratch_operands = 1 : i64, tpu.core_type = #tpu.core_type<tc>, window_params = [{transform_indices = @transform_0, window_bounds = array<i64: 32, 512>}, {transform_indices = @transform_1, window_bounds = array<i64: 32, 512>}, {transform_indices = @transform_2, window_bounds = array<i64: 1, 8, 128>}]} {
    %c0_i32 = arith.constant 0 : i32
    %0 = arith.cmpi eq, %arg1, %c0_i32 : i32
    %1 = arith.extui %0 : i1 to i32
    %c0_i32_0 = arith.constant 0 : i32
    %2 = arith.cmpi ne, %1, %c0_i32_0 : i32
    scf.if %2 {
      %cst_18 = arith.constant 0.000000e+00 : f32
      %50 = vector.broadcast %cst_18 : f32 to vector<1x1xf32>
      %c0_19 = arith.constant 0 : index
      %c0_20 = arith.constant 0 : index
      %51 = vector.load %arg5[%c0_19, %c0_20] : memref<1x1xf32, #tpu.memory_space<vmem>>, vector<1x1xf32>
      tpu.vector_store %arg5[%c0_19, %c0_20], %50 {strides = array<i32>} : memref<1x1xf32, #tpu.memory_space<vmem>>, vector<1x1xf32>,
    } else {
    }
    %c0 = arith.constant 0 : index
    %c0_1 = arith.constant 0 : index
    %3 = vector.load %arg2[%c0, %c0_1] : memref<32x512xf32, #tpu.memory_space<vmem>>, vector<32x512xf32>
    %c0_2 = arith.constant 0 : index
    %c0_3 = arith.constant 0 : index
    %4 = vector.load %arg3[%c0_2, %c0_3] : memref<32x512xi8, #tpu.memory_space<vmem>>, vector<32x512xi8>
    %5 = arith.extsi %4 : vector<32x512xi8> to vector<32x512xi32>
    %6 = tpu.iota {dimensions = array<i32: 1>} : vector<32x512xi32>
    %7 = tpu.iota {dimensions = array<i32: 0>} : vector<32x512xi32>
    %c1_i32 = arith.constant 1 : i32
    %8 = vector.broadcast %c1_i32 : i32 to vector<32x512xi32>
    %9 = arith.andi %6, %8 : vector<32x512xi32>
    %c1_i32_4 = arith.constant 1 : i32
    %10 = vector.broadcast %c1_i32_4 : i32 to vector<32x512xi32>
    %11 = arith.shrsi %6, %10 : vector<32x512xi32>
    %c1_i32_5 = arith.constant 1 : i32
    %12 = tpu.dynamic_rotate %3 by %c1_i32_5 dim 1 : vector<32x512xf32>, i32 -> vector<32x512xf32>
    %c1_i32_6 = arith.constant 1 : i32
    %13 = tpu.dynamic_rotate %11 by %c1_i32_6 dim 1 : vector<32x512xi32>, i32 -> vector<32x512xi32>
    %14 = arith.cmpi eq, %13, %11 : vector<32x512xi32>
    %15 = arith.cmpi eq, %5, %9 : vector<32x512xi32>
    %16 = arith.subf %12, %3 : vector<32x512xf32>
    %17 = arith.subf %3, %12 : vector<32x512xf32>
    %18 = arith.select %15, %16, %17 : vector<32x512xi1>, vector<32x512xf32>
    %cst = arith.constant 0.000000e+00 : f32
    %19 = vector.broadcast %cst : f32 to vector<32x512xf32>
    %20 = arith.maximumf %18, %19 : vector<32x512xf32>
    %21 = math.absf %18 : vector<32x512xf32>
    %cst_7 = arith.constant 0.000000e+00 : f32
    %22 = vector.broadcast %cst_7 : f32 to vector<32x512xf32>
    %23 = arith.subf %22, %21 : vector<32x512xf32>
    %24 = math.exp %23 : vector<32x512xf32>
    %25 = math.log1p %24 : vector<32x512xf32>
    %26 = arith.addf %20, %25 : vector<32x512xf32>
    %c1_i32_8 = arith.constant 1 : i32
    %27 = arith.muli %arg0, %c1_i32_8 : i32
    %28 = arith.addi %27, %arg1 : i32
    %c32_i32 = arith.constant 32 : i32
    %29 = arith.muli %28, %c32_i32 : i32
    %30 = vector.broadcast %29 : i32 to vector<32x512xi32>
    %31 = arith.addi %30, %7 : vector<32x512xi32>
    %c256_i32 = arith.constant 256 : i32
    %32 = vector.broadcast %c256_i32 : i32 to vector<32x512xi32>
    %33 = arith.muli %31, %32 : vector<32x512xi32>
    %34 = arith.addi %33, %11 : vector<32x512xi32>
    %c8_i32 = arith.constant 8 : i32
    %35 = vector.broadcast %c8_i32 : i32 to vector<32x512xi32>
    %36 = arith.cmpi slt, %34, %35 : vector<32x512xi32>
    %37 = arith.andi %14, %36 : vector<32x512xi1>
    %cst_9 = arith.constant 0.000000e+00 : f32
    %38 = vector.broadcast %cst_9 : f32 to vector<32x512xf32>
    %39 = arith.select %37, %26, %38 : vector<32x512xi1>, vector<32x512xf32>
    %cst_10 = arith.constant dense<0.000000e+00> : vector<32xf32>
    %40 = vector.multi_reduction <add>, %39, %cst_10 [1] : vector<32x512xf32> to vector<32xf32>
    %41 = vector.shape_cast %40 : vector<32xf32> to vector<32x1xf32>
    %cst_11 = arith.constant dense<0.000000e+00> : vector<1xf32>
    %42 = vector.multi_reduction <add>, %41, %cst_11 [0] : vector<32x1xf32> to vector<1xf32>
    %43 = vector.shape_cast %42 : vector<1xf32> to vector<1x1xf32>
    %c0_12 = arith.constant 0 : index
    %c0_13 = arith.constant 0 : index
    %44 = vector.load %arg5[%c0_12, %c0_13] : memref<1x1xf32, #tpu.memory_space<vmem>>, vector<1x1xf32>
    %45 = arith.addf %44, %43 : vector<1x1xf32>
    %c0_14 = arith.constant 0 : index
    %c0_15 = arith.constant 0 : index
    %46 = vector.load %arg5[%c0_14, %c0_15] : memref<1x1xf32, #tpu.memory_space<vmem>>, vector<1x1xf32>
    tpu.vector_store %arg5[%c0_14, %c0_15], %45 {strides = array<i32>} : memref<1x1xf32, #tpu.memory_space<vmem>>, vector<1x1xf32>,
    %c0_i32_16 = arith.constant 0 : i32
    %47 = arith.cmpi eq, %arg1, %c0_i32_16 : i32
    %48 = arith.extui %47 : i1 to i32
    %c0_i32_17 = arith.constant 0 : i32
    %49 = arith.cmpi ne, %48, %c0_i32_17 : i32
    scf.if %49 {
      %c0_18 = arith.constant 0 : index
      %c0_19 = arith.constant 0 : index
      %50 = vector.load %arg5[%c0_18, %c0_19] : memref<1x1xf32, #tpu.memory_space<vmem>>, vector<1x1xf32>
      %51 = vector.shape_cast %50 : vector<1x1xf32> to vector<1x1x1xf32>
      %52 = vector.broadcast %51 : vector<1x1x1xf32> to vector<1x8x128xf32>
      %c0_20 = arith.constant 0 : index
      %c0_21 = arith.constant 0 : index
      %c0_22 = arith.constant 0 : index
      %53 = vector.load %arg4[%c0_20, %c0_21, %c0_22] : memref<1x8x128xf32, #tpu.memory_space<vmem>>, vector<1x8x128xf32>
      tpu.vector_store %arg4[%c0_20, %c0_21, %c0_22], %52 {strides = array<i32>} : memref<1x8x128xf32, #tpu.memory_space<vmem>>, vector<1x8x128xf32>,
    } else {
    }
    return
  }
  func.func @transform_0(%arg0: i32, %arg1: i32) -> (i32, i32) {
    %c1_i32 = arith.constant 1 : i32
    %0 = arith.muli %arg0, %c1_i32 : i32
    %1 = arith.addi %0, %arg1 : i32
    %c0_i32 = arith.constant 0 : i32
    %c0_i32_0 = arith.constant 0 : i32
    return %1, %c0_i32 : i32, i32
  }
  func.func @transform_1(%arg0: i32, %arg1: i32) -> (i32, i32) {
    %c1_i32 = arith.constant 1 : i32
    %0 = arith.muli %arg0, %c1_i32 : i32
    %1 = arith.addi %0, %arg1 : i32
    %c0_i32 = arith.constant 0 : i32
    %c0_i32_0 = arith.constant 0 : i32
    return %1, %c0_i32 : i32, i32
  }
  func.func @transform_2(%arg0: i32, %arg1: i32) -> (i32, i32, i32) {
    %c0_i32 = arith.constant 0 : i32
    %c0_i32_0 = arith.constant 0 : i32
    %c0_i32_1 = arith.constant 0 : i32
    return %arg0, %c0_i32, %c0_i32_0 : i32, i32, i32
  }
}

</mosaic_0001>

<llo_original>
// kernel: sentim_loss.1
$region0: #{sentim_loss.1}
  #allocation0 [shape = 'u32[]', space=smem, size = 0x4, offset = 0x4, fixed_abs, tag = 'smem constant byte address 0x4 - core index']
  #allocation1 [shape = 'u32[144,128]{1,0:T(1,128)}', space=vmem, size = 0x12000, scoped, tag = 'internal scratch']
  #allocation2 [shape = 'f32[1,1]{1,0:T(1,128)}', space=vmem, size = 0x200, scoped, tag = 'scratch operand']
  %s0 = inlined_call_operand.vmem [shape: f32[64,512], index: 0, kind: input, shape index: {}]
  %s1 = inlined_call_operand.vmem [shape: s8[64,512], index: 1, kind: input, shape index: {}]
  %s2 = inlined_call_operand.vmem [shape: f32[2,8,128], index: 2, kind: output, shape index: {}]
  %s3 = sld [smem:[#allocation0]]
  $region49: #{sentim_loss.1} parent=0
    _
  %s5 = ssub.s32 1, %s3
  %s6 = scalar_select 0, %s5, %s3
  loop: start=0, step=1, limit=4
  $region2: #{sentim_loss.1} parent=0 // loop_pre_header
    _
  $region3: #{sentim_loss.1} parent=0 // loop_header
    %s8 = sphi 0, %s12
    %p9 = scmp.ge.s32.totalorder %s8, 4
    %s15 = sphi 0, %s27
    %s16 = sphi 0, %s23
    %s17 = sphi 0, %s15
    %s18 = sphi 0, %s16
    %s19 = sphi 0, %s17
    %s20 = sphi 0, %s18
    %s32 = sphi 0, %s34
    %s35 = sphi 0, %s32
    %s36 = sphi 0, %s35
    %s52 = sphi 0, %s36
    %s60 = sphi 0, %s62
    %s63 = sphi 0, %s60
    %s64 = sphi 0, %s63
    %s80 = sphi 0, %s64
    %s86 = sphi 0, %s88
    %s89 = sphi 0, %s86
    %s90 = sphi 0, %s89
    %s106 = sphi 0, %s90
  $region4: #{sentim_loss.1} parent=0 // loop_header_branch
    %11 = sbr.rel (%p9) target = $region8
  $region5: #{sentim_loss.1} parent=0 // loop_body
    %s13 = ssub.s32 %s8, 1
    %s14 = ssub.s32 %s8, 2
    %s21 = sadd.s32 1, %s16
    %p22 = scmp.ge.s32.totalorder %s21, 1
    %s23 = scalar_select %p22, 0, %s21
    %s24 = sadd.s32 1, %s15
    %s25 = scalar_select %p22, %s24, %s15
    %p26 = scmp.ge.s32.totalorder %s25, 2
    %s27 = scalar_select %p26, 0, %s25
    %s28 = sadd.s32 %s15, %s16
    %s29 = sadd.s32 %s27, %s23
    %s30 = ssub.s32 %s28, %s29
    %p31 = scmp.eq.s32.totalorder %s30, 0
    %s33 = sadd.s32 %s32, 1
    %s34 = scalar_select %p31, %s32, %s33
    %p37 = pneg %p31
    %p38 = scmp.eq.s32.totalorder %s8, 1
    %p39 = por %p37, %p38
    %p40 = scmp.ne.s32.totalorder %s32, %s35
    %p41 = scmp.eq.s32.totalorder %s8, 0
    %p42 = por %p40, %p41
    %p43 = scmp.ne.s32.totalorder %s32, %s35
    %p44 = scmp.eq.s32.totalorder %s13, 1
    %p45 = por %p43, %p44
    %p46 = scmp.ne.s32.totalorder %s35, %s36
    %p47 = scmp.eq.s32.totalorder %s13, 0
    %p48 = por %p46, %p47
    %p49 = scmp.ne.s32.totalorder %s35, %s36
    %p50 = scmp.eq.s32.totalorder %s14, 1
    %p51 = por %p49, %p50
    %p53 = scmp.ne.s32.totalorder %s36, %s52
    %p54 = scmp.eq.s32.totalorder %s14, 0
    %p55 = por %p53, %p54
    %s56 = sadd.s32 %s15, %s16
    %s57 = sadd.s32 %s27, %s23
    %s58 = ssub.s32 %s56, %s57
    %p59 = scmp.eq.s32.totalorder %s58, 0
    %s61 = sadd.s32 %s60, 1
    %s62 = scalar_select %p59, %s60, %s61
    %p65 = pneg %p59
    %p66 = scmp.eq.s32.totalorder %s8, 1
    %p67 = por %p65, %p66
    %p68 = scmp.ne.s32.totalorder %s60, %s63
    %p69 = scmp.eq.s32.totalorder %s8, 0
    %p70 = por %p68, %p69
    %p71 = scmp.ne.s32.totalorder %s60, %s63
    %p72 = scmp.eq.s32.totalorder %s13, 1
    %p73 = por %p71, %p72
    %p74 = scmp.ne.s32.totalorder %s63, %s64
    %p75 = scmp.eq.s32.totalorder %s13, 0
    %p76 = por %p74, %p75
    %p77 = scmp.ne.s32.totalorder %s63, %s64
    %p78 = scmp.eq.s32.totalorder %s14, 1
    %p79 = por %p77, %p78
    %p81 = scmp.ne.s32.totalorder %s64, %s80
    %p82 = scmp.eq.s32.totalorder %s14, 0
    %p83 = por %p81, %p82
    %s84 = ssub.s32 %s15, %s27
    %p85 = scmp.eq.s32.totalorder %s84, 0
    %s87 = sadd.s32 %s86, 1
    %s88 = scalar_select %p85, %s86, %s87
    %p91 = pneg %p85
    %p92 = scmp.eq.s32.totalorder %s8, 1
    %p93 = por %p91, %p92
    %p94 = scmp.ne.s32.totalorder %s86, %s89
    %p95 = scmp.eq.s32.totalorder %s8, 0
    %p96 = por %p94, %p95
    %p97 = scmp.ne.s32.totalorder %s86, %s89
    %p98 = scmp.eq.s32.totalorder %s13, 1
    %p99 = por %p97, %p98
    %p100 = scmp.ne.s32.totalorder %s89, %s90
    %p101 = scmp.eq.s32.totalorder %s13, 0
    %p102 = por %p100, %p101
    %p103 = scmp.ne.s32.totalorder %s89, %s90
    %p104 = scmp.eq.s32.totalorder %s14, 1
    %p105 = por %p103, %p104
    %p107 = scmp.ne.s32.totalorder %s90, %s106
    %p108 = scmp.eq.s32.totalorder %s14, 0
    %p109 = por %p107, %p108
    %p110 = scmp.le.s32.totalorder 1, %s8
    %p111 = scmp.lt.s32.totalorder %s8, 3
    %p112 = pnand %p110, %p111
    %p113 = pneg %p112
    // Predicated region
    $region9: #{sentim_loss.1} parent=5 // pred_check
      _
    $region10: #{sentim_loss.1} parent=5 // pred_check_branch
      %115 = sbr.rel (%p112) target = $region12
    $region11: #{sentim_loss.1} parent=5 // pred_region
      %s116 = ssub.s32 %s8, 1
    $region12: #{sentim_loss.1} parent=5 // pred_fallthru
      _
    %p117 = scmp.lt.s32.totalorder %s8, 2
    // Predicated region
    $region13: #{sentim_loss.1} parent=5 // pred_check
      %p118 = pneg %p117
    $region14: #{sentim_loss.1} parent=5 // pred_check_branch
      %120 = sbr.rel (%p118) target = $region16
    $region15: #{sentim_loss.1} parent=5 // pred_region
      // Predicated region
      $region17: #{sentim_loss.1} parent=15 // pred_check
        %p121 = pneg %p42
      $region18: #{sentim_loss.1} parent=15 // pred_check_branch
        %123 = sbr.rel (%p121) target = $region20
      $region19: #{sentim_loss.1} parent=15 // pred_region
        %s124 = sadd.s32 %s15, %s16
        %s125 = smul.u32 4, %s124
        %p126 = scmp.lt.s32.totalorder %s125, 7
        %s127 = scalar_select %p126, %s125, 7
        %s128 = smul.addr %s127, 4
        %s129 = smul.addr %s128, 8
        %s130 = scalar_lea.vmem %s0, %s129
        %s131 = sadd.s32 %s15, %s16
        %s132 = smul.u32 4, %s131
      $region20: #{sentim_loss.1} parent=15 // pred_fallthru
        _
      // Predicated region
      $region21: #{sentim_loss.1} parent=15 // pred_check
        %p133 = pneg %p70
      $region22: #{sentim_loss.1} parent=15 // pred_check_branch
        %135 = sbr.rel (%p133) target = $region24
      $region23: #{sentim_loss.1} parent=15 // pred_region
        %s136 = sadd.s32 %s15, %s16
        %p137 = scmp.lt.s32.totalorder %s136, 1
        %s138 = scalar_select %p137, %s136, 1
        %s139 = smul.addr %s138, 4
        %s140 = smul.addr %s139, 8
        %s141 = scalar_lea.vmem %s1, %s140
        %s142 = sadd.s32 %s15, %s16
      $region24: #{sentim_loss.1} parent=15 // pred_fallthru
        _
    $region16: #{sentim_loss.1} parent=5 // pred_fallthru
      _
    %p143 = scmp.le.s32.totalorder 1, %s8
    %p144 = scmp.lt.s32.totalorder %s8, 3
    %p145 = pnand %p143, %p144
    %p146 = pneg %p145
    // Predicated region
    $region25: #{sentim_loss.1} parent=5 // pred_check
      _
    $region26: #{sentim_loss.1} parent=5 // pred_check_branch
      %148 = sbr.rel (%p145) target = $region28
    $region27: #{sentim_loss.1} parent=5 // pred_region
      %s149 = ssub.s32 %s8, 1
      %s150 = sadd.s32 %s17, %s18
      %s151 = smul.u32 4, %s150
      %p152 = scmp.lt.s32.totalorder %s151, 7
      %s153 = scalar_select %p152, %s151, 7
      %s154 = smul.addr %s153, 4
      %s155 = smul.addr %s154, 8
      %s156 = scalar_lea.vmem %s0, %s155
      %p157 = pneg %p48
      %p158 = pneg %p45
      %s159 = sadd.s32 %s17, %s18
      %p160 = scmp.lt.s32.totalorder %s159, 1
      %s161 = scalar_select %p160, %s159, 1
      %s162 = smul.addr %s161, 4
      %s163 = smul.addr %s162, 8
      %s164 = scalar_lea.vmem %s1, %s163
      %p165 = pneg %p76
      %p166 = pneg %p73
      %p167 = pneg %p102
      %p168 = pneg %p99
      %p169 = scmp.lt.s32.totalorder %s17, 1
      %s170 = scalar_select %p169, %s17, 1
      %s171 = smul.addr %s170, 8
      %s172 = scalar_lea.vmem %s2, %s171
      %s173 = sadd.s32 %s17, %s18
      %s174 = smul.u32 4, %s173
      %p175 = scmp.lt.s32.totalorder %s174, 7
      %s176 = scalar_select %p175, %s174, 7
      %s177 = smul.addr %s176, 4
      %s178 = smul.addr %s177, 8
      %s179 = scalar_lea.vmem %s0, %s178
      %s180 = sadd.s32 %s17, %s18
      %s181 = smul.u32 4, %s180
      %s182 = sadd.s32 %s17, %s18
      %p183 = scmp.lt.s32.totalorder %s182, 1
      %s184 = scalar_select %p183, %s182, 1
      %s185 = smul.addr %s184, 4
      %s186 = smul.addr %s185, 8
      %s187 = scalar_lea.vmem %s1, %s186
      %s188 = sadd.s32 %s17, %s18
      %p189 = scmp.lt.s32.totalorder %s17, 1
      %s190 = scalar_select %p189, %s17, 1
      %s191 = smul.addr %s190, 8
      %s192 = scalar_lea.vmem %s2, %s191
      %p193 = scmp.eq.s32.totalorder %s18, 0
      // Predicated region
      $region29: #{sentim_loss.1} parent=27 // pred_check
        %p194 = pneg %p193
      $region30: #{sentim_loss.1} parent=27 // pred_check_branch
        %196 = sbr.rel (%p194) target = $region32
      $region31: #{sentim_loss.1} parent=27 // pred_region
        %vm197 = vcmask 0
        %198 = vst.msk [vmem:[#allocation2] sm:$0x1] %vm197, 0.0
      $region32: #{sentim_loss.1} parent=27 // pred_fallthru
        _
      %v199 = vld [vmem:[%s179] sm:$0xff]
      %v200 = vld [vmem:[%s179 + $0x8] sm:$0xff]
      %v201 = vld [vmem:[%s179 + $0x10] sm:$0xff]
      %v202 = vld [vmem:[%s179 + $0x18] sm:$0xff]
      %v203 = vld [vmem:[%s179 + $0x20] sm:$0xff]
      %v204 = vld [vmem:[%s179 + $0x28] sm:$0xff]
      %v205 = vld [vmem:[%s179 + $0x30] sm:$0xff]
      %v206 = vld [vmem:[%s179 + $0x38] sm:$0xff]
      %v207 = vld [vmem:[%s179 + $0x40] sm:$0xff]
      %v208 = vld [vmem:[%s179 + $0x48] sm:$0xff]
      %v209 = vld [vmem:[%s179 + $0x50] sm:$0xff]
      %v210 = vld [vmem:[%s179 + $0x58] sm:$0xff]
      %v211 = vld [vmem:[%s179 + $0x60] sm:$0xff]
      %v212 = vld [vmem:[%s179 + $0x68] sm:$0xff]
      %v213 = vld [vmem:[%s179 + $0x70] sm:$0xff]
      %v214 = vld [vmem:[%s179 + $0x78] sm:$0xff]
      %v215 = vld [vmem:[%s187] sm:$0xff]
      %v216 = vld [vmem:[%s187 + $0x8] sm:$0xff]
      %v217 = vld [vmem:[%s187 + $0x10] sm:$0xff]
      %v218 = vld [vmem:[%s187 + $0x18] sm:$0xff]
      %v219 = vunpack.c.0.s8 %v215
      %v220 = vunpack.c.0.s8 %v216
      %v221 = vunpack.c.0.s8 %v217
      %v222 = vunpack.c.0.s8 %v218
      %v223 = vunpack.c.1.s8 %v215
      %v224 = vunpack.c.1.s8 %v216
      %v225 = vunpack.c.1.s8 %v217
      %v226 = vunpack.c.1.s8 %v218
      %v227 = vunpack.c.2.s8 %v215
      %v228 = vunpack.c.2.s8 %v216
      %v229 = vunpack.c.2.s8 %v217
      %v230 = vunpack.c.2.s8 %v218
      %v231 = vunpack.c.3.s8 %v215
      %v232 = vunpack.c.3.s8 %v216
      %v233 = vunpack.c.3.s8 %v217
      %v234 = vunpack.c.3.s8 %v218
      %v235 = vlaneseq
      %v236 = vand.u32 %v235, 127
      %v237 = vadd.s32 %v236, 128
      %v238 = vadd.s32 %v236, 256
      %v239 = vadd.s32 %v236, 384
      %v240 = vlaneseq
      %v241 = vshrl.u32 %v240, 7
      %v242 = vadd.s32 %v241, 8
      %v243 = vadd.s32 %v241, 16
      %v244 = vadd.s32 %v241, 24
      %v245 = vand.u32 %v236, 1
      %v246 = vand.u32 %v237, 1
      %v247 = vand.u32 %v238, 1
      %v248 = vand.u32 %v239, 1
      %v249 = vshra.s32 %v236, 1
      %v250 = vshra.s32 %v237, 1
      %v251 = vshra.s32 %v238, 1
      %v252 = vshra.s32 %v239, 1
      %253 = vrot.lane.b32.xlu0 %v199, 1
      %v254 = vpop.permute.xlu0 %253
      %255 = vrot.lane.b32.xlu0 %v203, 1
      %v256 = vpop.permute.xlu0 %255
      %257 = vrot.lane.b32.xlu0 %v207, 1
      %v258 = vpop.permute.xlu0 %257
      %259 = vrot.lane.b32.xlu0 %v211, 1
      %v260 = vpop.permute.xlu0 %259
      %261 = vrot.lane.b32.xlu0 %v200, 1
      %v262 = vpop.permute.xlu0 %261
      %263 = vrot.lane.b32.xlu0 %v204, 1
      %v264 = vpop.permute.xlu0 %263
      %265 = vrot.lane.b32.xlu0 %v208, 1
      %v266 = vpop.permute.xlu0 %265
      %267 = vrot.lane.b32.xlu0 %v212, 1
      %v268 = vpop.permute.xlu0 %267
      %269 = vrot.lane.b32.xlu0 %v201, 1
      %v270 = vpop.permute.xlu0 %269
      %271 = vrot.lane.b32.xlu0 %v205, 1
      %v272 = vpop.permute.xlu0 %271
      %273 = vrot.lane.b32.xlu0 %v209, 1
      %v274 = vpop.permute.xlu0 %273
      %275 = vrot.lane.b32.xlu0 %v213, 1
      %v276 = vpop.permute.xlu0 %275
      %277 = vrot.lane.b32.xlu0 %v202, 1
      %v278 = vpop.permute.xlu0 %277
      %279 = vrot.lane.b32.xlu0 %v206, 1
      %v280 = vpop.permute.xlu0 %279
      %281 = vrot.lane.b32.xlu0 %v210, 1
      %v282 = vpop.permute.xlu0 %281
      %283 = vrot.lane.b32.xlu0 %v214, 1
      %v284 = vpop.permute.xlu0 %283
      %vm285 = vcmp.lt.s32.totalorder %v236, 1
      %v286 = vsel %vm285, %v270, %v278
      %v287 = vsel %vm285, %v272, %v280
      %v288 = vsel %vm285, %v274, %v282
      %v289 = vsel %vm285, %v276, %v284
      %v290 = vsel %vm285, %v262, %v270
      %v291 = vsel %vm285, %v264, %v272
      %v292 = vsel %vm285, %v266, %v274
      %v293 = vsel %vm285, %v268, %v276
      %v294 = vsel %vm285, %v254, %v262
      %v295 = vsel %vm285, %v256, %v264
      %v296 = vsel %vm285, %v258, %v266
      %v297 = vsel %vm285, %v260, %v268
      %v298 = vsel %vm285, %v278, %v254
      %v299 = vsel %vm285, %v280, %v256
      %v300 = vsel %vm285, %v282, %v258
      %v301 = vsel %vm285, %v284, %v260
      %302 = vrot.lane.b32.xlu0 %v249, 1
      %v303 = vpop.permute.xlu0 %302
      %304 = vrot.lane.b32.xlu0 %v250, 1
      %v305 = vpop.permute.xlu0 %304
      %306 = vrot.lane.b32.xlu0 %v251, 1
      %v307 = vpop.permute.xlu0 %306
      %308 = vrot.lane.b32.xlu0 %v252, 1
      %v309 = vpop.permute.xlu0 %308
      %v310 = vsel %vm285, %v307, %v309
      %v311 = vsel %vm285, %v305, %v307
      %v312 = vsel %vm285, %v303, %v305
      %v313 = vsel %vm285, %v309, %v303
      %vm314 = vcmp.eq.s32.totalorder %v313, %v249
      %vm315 = vcmp.eq.s32.totalorder %v312, %v250
      %vm316 = vcmp.eq.s32.totalorder %v311, %v251
      %vm317 = vcmp.eq.s32.totalorder %v310, %v252
      %vm318 = vcmp.eq.s32.totalorder %v219, %v245
      %vm319 = vcmp.eq.s32.totalorder %v220, %v246
      %vm320 = vcmp.eq.s32.totalorder %v221, %v247
      %vm321 = vcmp.eq.s32.totalorder %v222, %v248
      %vm322 = vcmp.eq.s32.totalorder %v223, %v245
      %vm323 = vcmp.eq.s32.totalorder %v224, %v246
      %vm324 = vcmp.eq.s32.totalorder %v225, %v247
      %vm325 = vcmp.eq.s32.totalorder %v226, %v248
      %vm326 = vcmp.eq.s32.totalorder %v227, %v245
      %vm327 = vcmp.eq.s32.totalorder %v228, %v246
      %vm328 = vcmp.eq.s32.totalorder %v229, %v247
      %vm329 = vcmp.eq.s32.totalorder %v230, %v248
      %vm330 = vcmp.eq.s32.totalorder %v231, %v245
      %vm331 = vcmp.eq.s32.totalorder %v232, %v246
      %vm332 = vcmp.eq.s32.totalorder %v233, %v247
      %vm333 = vcmp.eq.s32.totalorder %v234, %v248
      %v334 = vsub.f32 %v298, %v199
      %v335 = vsub.f32 %v294, %v200
      %v336 = vsub.f32 %v290, %v201
      %v337 = vsub.f32 %v286, %v202
      %v338 = vsub.f32 %v299, %v203
      %v339 = vsub.f32 %v295, %v204
      %v340 = vsub.f32 %v291, %v205
      %v341 = vsub.f32 %v287, %v206
      %v342 = vsub.f32 %v300, %v207
      %v343 = vsub.f32 %v296, %v208
      %v344 = vsub.f32 %v292, %v209
      %v345 = vsub.f32 %v288, %v210
      %v346 = vsub.f32 %v301, %v211
      %v347 = vsub.f32 %v297, %v212
      %v348 = vsub.f32 %v293, %v213
      %v349 = vsub.f32 %v289, %v214
      %v350 = vsub.f32 %v199, %v298
      %v351 = vsub.f32 %v200, %v294
      %v352 = vsub.f32 %v201, %v290
      %v353 = vsub.f32 %v202, %v286
      %v354 = vsub.f32 %v203, %v299
      %v355 = vsub.f32 %v204, %v295
      %v356 = vsub.f32 %v205, %v291
      %v357 = vsub.f32 %v206, %v287
      %v358 = vsub.f32 %v207, %v300
      %v359 = vsub.f32 %v208, %v296
      %v360 = vsub.f32 %v209, %v292
      %v361 = vsub.f32 %v210, %v288
      %v362 = vsub.f32 %v211, %v301
      %v363 = vsub.f32 %v212, %v297
      %v364 = vsub.f32 %v213, %v293
      %v365 = vsub.f32 %v214, %v289
      %v366 = vsel %vm318, %v334, %v350
      %v367 = vsel %vm319, %v335, %v351
      %v368 = vsel %vm320, %v336, %v352
      %v369 = vsel %vm321, %v337, %v353
      %v370 = vsel %vm322, %v338, %v354
      %v371 = vsel %vm323, %v339, %v355
      %v372 = vsel %vm324, %v340, %v356
      %v373 = vsel %vm325, %v341, %v357
      %v374 = vsel %vm326, %v342, %v358
      %v375 = vsel %vm327, %v343, %v359
      %v376 = vsel %vm328, %v344, %v360
      %v377 = vsel %vm329, %v345, %v361
      %v378 = vsel %vm330, %v346, %v362
      %v379 = vsel %vm331, %v347, %v363
      %v380 = vsel %vm332, %v348, %v364
      %v381 = vsel %vm333, %v349, %v365
      %v382 = vmax.f32 %v366, 0.0
      %v383 = vmax.f32 %v367, 0.0
      %v384 = vmax.f32 %v368, 0.0
      %v385 = vmax.f32 %v369, 0.0
      %v386 = vmax.f32 %v370, 0.0
      %v387 = vmax.f32 %v371, 0.0
      %v388 = vmax.f32 %v372, 0.0
      %v389 = vmax.f32 %v373, 0.0
      %v390 = vmax.f32 %v374, 0.0
      %v391 = vmax.f32 %v375, 0.0
      %v392 = vmax.f32 %v376, 0.0
      %v393 = vmax.f32 %v377, 0.0
      %v394 = vmax.f32 %v378, 0.0
      %v395 = vmax.f32 %v379, 0.0
      %v396 = vmax.f32 %v380, 0.0
      %v397 = vmax.f32 %v381, 0.0
      %v398 = vand.u32 2147483647, %v366
      %v399 = vand.u32 2147483647, %v367
      %v400 = vand.u32 2147483647, %v368
      %v401 = vand.u32 2147483647, %v369
      %v402 = vand.u32 2147483647, %v370
      %v403 = vand.u32 2147483647, %v371
      %v404 = vand.u32 2147483647, %v372
      %v405 = vand.u32 2147483647, %v373
      %v406 = vand.u32 2147483647, %v374
      %v407 = vand.u32 2147483647, %v375
      %v408 = vand.u32 2147483647, %v376
      %v409 = vand.u32 2147483647, %v377
      %v410 = vand.u32 2147483647, %v378
      %v411 = vand.u32 2147483647, %v379
      %v412 = vand.u32 2147483647, %v380
      %v413 = vand.u32 2147483647, %v381
      %v414 = vsub.f32 0.0, %v398
      %v415 = vsub.f32 0.0, %v399
      %v416 = vsub.f32 0.0, %v400
      %v417 = vsub.f32 0.0, %v401
      %v418 = vsub.f32 0.0, %v402
      %v419 = vsub.f32 0.0, %v403
      %v420 = vsub.f32 0.0, %v404
      %v421 = vsub.f32 0.0, %v405
      %v422 = vsub.f32 0.0, %v406
      %v423 = vsub.f32 0.0, %v407
      %v424 = vsub.f32 0.0, %v408
      %v425 = vsub.f32 0.0, %v409
      %v426 = vsub.f32 0.0, %v410
      %v427 = vsub.f32 0.0, %v411
      %v428 = vsub.f32 0.0, %v412
      %v429 = vsub.f32 0.0, %v413
      %v430 = vmul.f32 %v414, 1.442695
      %v431 = vpow.pop %v430
      %v432 = vmul.f32 %v415, 1.442695
      %v433 = vpow.pop %v432
      %v434 = vmul.f32 %v416, 1.442695
      %v435 = vpow.pop %v434
      %v436 = vmul.f32 %v417, 1.442695
      %v437 = vpow.pop %v436
      %v438 = vmul.f32 %v418, 1.442695
      %v439 = vpow.pop %v438
      %v440 = vmul.f32 %v419, 1.442695
      %v441 = vpow.pop %v440
      %v442 = vmul.f32 %v420, 1.442695
      %v443 = vpow.pop %v442
      %v444 = vmul.f32 %v421, 1.442695
      %v445 = vpow.pop %v444
      %v446 = vmul.f32 %v422, 1.442695
      %v447 = vpow.pop %v446
      %v448 = vmul.f32 %v423, 1.442695
      %v449 = vpow.pop %v448
      %v450 = vmul.f32 %v424, 1.442695
      %v451 = vpow.pop %v450
      %v452 = vmul.f32 %v425, 1.442695
      %v453 = vpow.pop %v452
      %v454 = vmul.f32 %v426, 1.442695
      %v455 = vpow.pop %v454
      %v456 = vmul.f32 %v427, 1.442695
      %v457 = vpow.pop %v456
      %v458 = vmul.f32 %v428, 1.442695
      %v459 = vpow.pop %v458
      %v460 = vmul.f32 %v429, 1.442695
      %v461 = vpow.pop %v460
      %v462 = vadd.f32 %v431, 1.0
      %v463 = vlog2.pop %v462
      %v464 = vmul.f32 %v463, 0.6931472
      %v465 = vmul.f32 -0.5, %v431
      %v466 = vadd.f32 %v465, 1.0
      %v467 = vmul.f32 %v466, %v431
      %v468 = vand.u32 2147483647, %v431
      %vm469 = vcmp.lt.f32.partialorder %v468, 0.0004427343
      %v470 = vsel %vm469, %v467, %v464
      %v471 = vadd.f32 %v433, 1.0
      %v472 = vlog2.pop %v471
      %v473 = vmul.f32 %v472, 0.6931472
      %v474 = vmul.f32 -0.5, %v433
      %v475 = vadd.f32 %v474, 1.0
      %v476 = vmul.f32 %v475, %v433
      %v477 = vand.u32 2147483647, %v433
      %vm478 = vcmp.lt.f32.partialorder %v477, 0.0004427343
      %v479 = vsel %vm478, %v476, %v473
      %v480 = vadd.f32 %v435, 1.0
      %v481 = vlog2.pop %v480
      %v482 = vmul.f32 %v481, 0.6931472
      %v483 = vmul.f32 -0.5, %v435
      %v484 = vadd.f32 %v483, 1.0
      %v485 = vmul.f32 %v484, %v435
      %v486 = vand.u32 2147483647, %v435
      %vm487 = vcmp.lt.f32.partialorder %v486, 0.0004427343
      %v488 = vsel %vm487, %v485, %v482
      %v489 = vadd.f32 %v437, 1.0
      %v490 = vlog2.pop %v489
      %v491 = vmul.f32 %v490, 0.6931472
      %v492 = vmul.f32 -0.5, %v437
      %v493 = vadd.f32 %v492, 1.0
      %v494 = vmul.f32 %v493, %v437
      %v495 = vand.u32 2147483647, %v437
      %vm496 = vcmp.lt.f32.partialorder %v495, 0.0004427343
      %v497 = vsel %vm496, %v494, %v491
      %v498 = vadd.f32 %v439, 1.0
      %v499 = vlog2.pop %v498
      %v500 = vmul.f32 %v499, 0.6931472
      %v501 = vmul.f32 -0.5, %v439
      %v502 = vadd.f32 %v501, 1.0
      %v503 = vmul.f32 %v502, %v439
      %v504 = vand.u32 2147483647, %v439
      %vm505 = vcmp.lt.f32.partialorder %v504, 0.0004427343
      %v506 = vsel %vm505, %v503, %v500
      %v507 = vadd.f32 %v441, 1.0
      %v508 = vlog2.pop %v507
      %v509 = vmul.f32 %v508, 0.6931472
      %v510 = vmul.f32 -0.5, %v441
      %v511 = vadd.f32 %v510, 1.0
      %v512 = vmul.f32 %v511, %v441
      %v513 = vand.u32 2147483647, %v441
      %vm514 = vcmp.lt.f32.partialorder %v513, 0.0004427343
      %v515 = vsel %vm514, %v512, %v509
      %v516 = vadd.f32 %v443, 1.0
      %v517 = vlog2.pop %v516
      %v518 = vmul.f32 %v517, 0.6931472
      %v519 = vmul.f32 -0.5, %v443
      %v520 = vadd.f32 %v519, 1.0
      %v521 = vmul.f32 %v520, %v443
      %v522 = vand.u32 2147483647, %v443
      %vm523 = vcmp.lt.f32.partialorder %v522, 0.0004427343
      %v524 = vsel %vm523, %v521, %v518
      %v525 = vadd.f32 %v445, 1.0
      %v526 = vlog2.pop %v525
      %v527 = vmul.f32 %v526, 0.6931472
      %v528 = vmul.f32 -0.5, %v445
      %v529 = vadd.f32 %v528, 1.0
      %v530 = vmul.f32 %v529, %v445
      %v531 = vand.u32 2147483647, %v445
      %vm532 = vcmp.lt.f32.partialorder %v531, 0.0004427343
      %v533 = vsel %vm532, %v530, %v527
      %v534 = vadd.f32 %v447, 1.0
      %v535 = vlog2.pop %v534
      %v536 = vmul.f32 %v535, 0.6931472
      %v537 = vmul.f32 -0.5, %v447
      %v538 = vadd.f32 %v537, 1.0
      %v539 = vmul.f32 %v538, %v447
      %v540 = vand.u32 2147483647, %v447
      %vm541 = vcmp.lt.f32.partialorder %v540, 0.0004427343
      %v542 = vsel %vm541, %v539, %v536
      %v543 = vadd.f32 %v449, 1.0
      %v544 = vlog2.pop %v543
      %v545 = vmul.f32 %v544, 0.6931472
      %v546 = vmul.f32 -0.5, %v449
      %v547 = vadd.f32 %v546, 1.0
      %v548 = vmul.f32 %v547, %v449
      %v549 = vand.u32 2147483647, %v449
      %vm550 = vcmp.lt.f32.partialorder %v549, 0.0004427343
      %v551 = vsel %vm550, %v548, %v545
      %v552 = vadd.f32 %v451, 1.0
      %v553 = vlog2.pop %v552
      %v554 = vmul.f32 %v553, 0.6931472
      %v555 = vmul.f32 -0.5, %v451
      %v556 = vadd.f32 %v555, 1.0
      %v557 = vmul.f32 %v556, %v451
      %v558 = vand.u32 2147483647, %v451
      %vm559 = vcmp.lt.f32.partialorder %v558, 0.0004427343
      %v560 = vsel %vm559, %v557, %v554
      %v561 = vadd.f32 %v453, 1.0
      %v562 = vlog2.pop %v561
      %v563 = vmul.f32 %v562, 0.6931472
      %v564 = vmul.f32 -0.5, %v453
      %v565 = vadd.f32 %v564, 1.0
      %v566 = vmul.f32 %v565, %v453
      %v567 = vand.u32 2147483647, %v453
      %vm568 = vcmp.lt.f32.partialorder %v567, 0.0004427343
      %v569 = vsel %vm568, %v566, %v563
      %v570 = vadd.f32 %v455, 1.0
      %v571 = vlog2.pop %v570
      %v572 = vmul.f32 %v571, 0.6931472
      %v573 = vmul.f32 -0.5, %v455
      %v574 = vadd.f32 %v573, 1.0
      %v575 = vmul.f32 %v574, %v455
      %v576 = vand.u32 2147483647, %v455
      %vm577 = vcmp.lt.f32.partialorder %v576, 0.0004427343
      %v578 = vsel %vm577, %v575, %v572
      %v579 = vadd.f32 %v457, 1.0
      %v580 = vlog2.pop %v579
      %v581 = vmul.f32 %v580, 0.6931472
      %v582 = vmul.f32 -0.5, %v457
      %v583 = vadd.f32 %v582, 1.0
      %v584 = vmul.f32 %v583, %v457
      %v585 = vand.u32 2147483647, %v457
      %vm586 = vcmp.lt.f32.partialorder %v585, 0.0004427343
      %v587 = vsel %vm586, %v584, %v581
      %v588 = vadd.f32 %v459, 1.0
      %v589 = vlog2.pop %v588
      %v590 = vmul.f32 %v589, 0.6931472
      %v591 = vmul.f32 -0.5, %v459
      %v592 = vadd.f32 %v591, 1.0
      %v593 = vmul.f32 %v592, %v459
      %v594 = vand.u32 2147483647, %v459
      %vm595 = vcmp.lt.f32.partialorder %v594, 0.0004427343
      %v596 = vsel %vm595, %v593, %v590
      %v597 = vadd.f32 %v461, 1.0
      %v598 = vlog2.pop %v597
      %v599 = vmul.f32 %v598, 0.6931472
      %v600 = vmul.f32 -0.5, %v461
      %v601 = vadd.f32 %v600, 1.0
      %v602 = vmul.f32 %v601, %v461
      %v603 = vand.u32 2147483647, %v461
      %vm604 = vcmp.lt.f32.partialorder %v603, 0.0004427343
      %v605 = vsel %vm604, %v602, %v599
      %v606 = vadd.f32 %v382, %v470
      %v607 = vadd.f32 %v383, %v479
      %v608 = vadd.f32 %v384, %v488
      %v609 = vadd.f32 %v385, %v497
      %v610 = vadd.f32 %v386, %v506
      %v611 = vadd.f32 %v387, %v515
      %v612 = vadd.f32 %v388, %v524
      %v613 = vadd.f32 %v389, %v533
      %v614 = vadd.f32 %v390, %v542
      %v615 = vadd.f32 %v391, %v551
      %v616 = vadd.f32 %v392, %v560
      %v617 = vadd.f32 %v393, %v569
      %v618 = vadd.f32 %v394, %v578
      %v619 = vadd.f32 %v395, %v587
      %v620 = vadd.f32 %v396, %v596
      %v621 = vadd.f32 %v397, %v605
      %s622 = sadd.s32 %s17, %s18
      %s623 = smul.u32 %s622, 32
      %v624 = vstv %s623
      %v625 = vadd.s32 %v624, %v241
      %v626 = vadd.s32 %v624, %v242
      %v627 = vadd.s32 %v624, %v243
      %v628 = vadd.s32 %v624, %v244
      %v629 = vmul.u32 %v625, 256
      %v630 = vmul.u32 %v626, 256
      %v631 = vmul.u32 %v627, 256
      %v632 = vmul.u32 %v628, 256
      %v633 = vadd.s32 %v629, %v249
      %v634 = vadd.s32 %v629, %v250
      %v635 = vadd.s32 %v629, %v251
      %v636 = vadd.s32 %v629, %v252
      %v637 = vadd.s32 %v630, %v249
      %v638 = vadd.s32 %v630, %v250
      %v639 = vadd.s32 %v630, %v251
      %v640 = vadd.s32 %v630, %v252
      %v641 = vadd.s32 %v631, %v249
      %v642 = vadd.s32 %v631, %v250
      %v643 = vadd.s32 %v631, %v251
      %v644 = vadd.s32 %v631, %v252
      %v645 = vadd.s32 %v632, %v249
      %v646 = vadd.s32 %v632, %v250
      %v647 = vadd.s32 %v632, %v251
      %v648 = vadd.s32 %v632, %v252
      %vm649 = vcmp.lt.s32.totalorder %v633, 8
      %vm650 = vcmp.lt.s32.totalorder %v634, 8
      %vm651 = vcmp.lt.s32.totalorder %v635, 8
      %vm652 = vcmp.lt.s32.totalorder %v636, 8
      %vm653 = vcmp.lt.s32.totalorder %v637, 8
      %vm654 = vcmp.lt.s32.totalorder %v638, 8
      %vm655 = vcmp.lt.s32.totalorder %v639, 8
      %vm656 = vcmp.lt.s32.totalorder %v640, 8
      %vm657 = vcmp.lt.s32.totalorder %v641, 8
      %vm658 = vcmp.lt.s32.totalorder %v642, 8
      %vm659 = vcmp.lt.s32.totalorder %v643, 8
      %vm660 = vcmp.lt.s32.totalorder %v644, 8
      %vm661 = vcmp.lt.s32.totalorder %v645, 8
      %vm662 = vcmp.lt.s32.totalorder %v646, 8
      %vm663 = vcmp.lt.s32.totalorder %v647, 8
      %vm664 = vcmp.lt.s32.totalorder %v648, 8
      %vm665 = vmand %vm314, %vm649
      %vm666 = vmand %vm315, %vm650
      %vm667 = vmand %vm316, %vm651
      %vm668 = vmand %vm317, %vm652
      %vm669 = vmand %vm314, %vm653
      %vm670 = vmand %vm315, %vm654
      %vm671 = vmand %vm316, %vm655
      %vm672 = vmand %vm317, %vm656
      %vm673 = vmand %vm314, %vm657
      %vm674 = vmand %vm315, %vm658
      %vm675 = vmand %vm316, %vm659
      %vm676 = vmand %vm317, %vm660
      %vm677 = vmand %vm314, %vm661
      %vm678 = vmand %vm315, %vm662
      %vm679 = vmand %vm316, %vm663
      %vm680 = vmand %vm317, %vm664
      %v681 = vsel %vm665, %v606, 0.0
      %v682 = vsel %vm666, %v607, 0.0
      %v683 = vsel %vm667, %v608, 0.0
      %v684 = vsel %vm668, %v609, 0.0
      %v685 = vsel %vm669, %v610, 0.0
      %v686 = vsel %vm670, %v611, 0.0
      %v687 = vsel %vm671, %v612, 0.0
      %v688 = vsel %vm672, %v613, 0.0
      %v689 = vsel %vm673, %v614, 0.0
      %v690 = vsel %vm674, %v615, 0.0
      %v691 = vsel %vm675, %v616, 0.0
      %v692 = vsel %vm676, %v617, 0.0
      %v693 = vsel %vm677, %v618, 0.0
      %v694 = vsel %vm678, %v619, 0.0
      %v695 = vsel %vm679, %v620, 0.0
      %v696 = vsel %vm680, %v621, 0.0
      %v697 = vadd.f32 %v681, %v682
      %v698 = vadd.f32 %v697, %v683
      %v699 = vadd.f32 %v698, %v684
      %700 = vadd.xlane.f32.xlu0 %v699
      %v701 = vpop.xlane.xlu0 %700
      %v702 = vadd.f32 %v685, %v686
      %v703 = vadd.f32 %v702, %v687
      %v704 = vadd.f32 %v703, %v688
      %705 = vadd.xlane.f32.xlu0 %v704
      %v706 = vpop.xlane.xlu0 %705
      %v707 = vadd.f32 %v689, %v690
      %v708 = vadd.f32 %v707, %v691
      %v709 = vadd.f32 %v708, %v692
      %710 = vadd.xlane.f32.xlu0 %v709
      %v711 = vpop.xlane.xlu0 %710
      %v712 = vadd.f32 %v693, %v694
      %v713 = vadd.f32 %v712, %v695
      %v714 = vadd.f32 %v713, %v696
      %715 = vadd.xlane.f32.xlu0 %v714
      %v716 = vpop.xlane.xlu0 %715
      %v717 = vadd.f32 %v701, %v706
      %v718 = vadd.f32 %v717, %v711
      %v719 = vadd.f32 %v718, %v716
      %v720 = vrot.slane %v719, 4
      %v721 = vadd.f32 %v719, %v720
      %v722 = vrot.slane %v721, 2
      %v723 = vadd.f32 %v721, %v722
      %v724 = vrot.slane %v723, 1
      %v725 = vadd.f32 %v723, %v724
      %v726 = vld [vmem:[#allocation2] sm:$0x1]
      %v727 = vadd.f32 %v726, %v725
      %vm728 = vcmask 0
      %729 = vst.msk [vmem:[#allocation2] sm:$0x1] %vm728, %v727
      // Predicated region
      $region33: #{sentim_loss.1} parent=27 // pred_check
        %p730 = pneg %p193
      $region34: #{sentim_loss.1} parent=27 // pred_check_branch
        %732 = sbr.rel (%p730) target = $region36
      $region35: #{sentim_loss.1} parent=27 // pred_region
        %v733 = vld [vmem:[#allocation2] sm:$0x1]
        %v735 = vlaneseq
        %v736 = vshrl.u32 %v735, 7
        %v737 = vsub.s32 0, %v736
        %v738 = vrot.slane %v733, %v737
        %739 = vset.pattern.permute.xlu0 0
        %740 = vperm.xlu0 %739, %v738
        %v741 = vpop.permute.xlu0 %740
        %743 = vst [vmem:[%s192] sm:$0xff] %v741
      $region36: #{sentim_loss.1} parent=27 // pred_fallthru
        _
      %p744 = scmp.lt.s32.totalorder %s17, 1
      %s745 = scalar_select %p744, %s17, 1
      %s746 = smul.addr %s745, 8
      %s747 = scalar_lea.vmem %s2, %s746
      // Predicated region
      $region37: #{sentim_loss.1} parent=27 // pred_check
        %p748 = pneg %p99
      $region38: #{sentim_loss.1} parent=27 // pred_check_branch
        %750 = sbr.rel (%p748) target = $region40
      $region39: #{sentim_loss.1} parent=27 // pred_region
        _
      $region40: #{sentim_loss.1} parent=27 // pred_fallthru
        _
    $region28: #{sentim_loss.1} parent=5 // pred_fallthru
      _
    %p751 = scmp.le.s32.totalorder 2, %s8
    // Predicated region
    $region41: #{sentim_loss.1} parent=5 // pred_check
      %p752 = pneg %p751
    $region42: #{sentim_loss.1} parent=5 // pred_check_branch
      %754 = sbr.rel (%p752) target = $region44
    $region43: #{sentim_loss.1} parent=5 // pred_region
      %s755 = ssub.s32 %s8, 2
      // Predicated region
      $region45: #{sentim_loss.1} parent=43 // pred_check
        %p756 = pneg %p105
      $region46: #{sentim_loss.1} parent=43 // pred_check_branch
        %758 = sbr.rel (%p756) target = $region48
      $region47: #{sentim_loss.1} parent=43 // pred_region
        %p759 = scmp.lt.s32.totalorder %s19, 1
        %s760 = scalar_select %p759, %s19, 1
        %s761 = smul.addr %s760, 8
        %s762 = scalar_lea.vmem %s2, %s761
      $region48: #{sentim_loss.1} parent=43 // pred_fallthru
        _
    $region44: #{sentim_loss.1} parent=5 // pred_fallthru
      _
  $region6: #{sentim_loss.1} parent=0 // loop_footer
    %s12 = sadd.s32 1, %s8
  $region7: #{sentim_loss.1} parent=0 // loop_footer_branch
    %7 = sbr.rel target = $region3
  $region8: #{sentim_loss.1} parent=0 // loop_exit
    _

</llo_original>
